<compile_context>
chip_gen: v7x
topology: tpu7x:2x2x1
jax: 0.10.0
libtpu: 0.0.40
codegen_flags: <defaults>
</compile_context>

<pallas_src>
import functools

import jax
import jax.numpy as jnp
import numpy as np
from jax.experimental import pallas as pl
from jax.experimental.pallas import tpu as pltpu

LANE = 128                        # lane tile (last dim)
SUB = 16                          # sublane alignment covering f32 (8) and bf16 (16)
N_CHUNK = 128                     # live f32 accumulator is at most (Mt, N_CHUNK)
_MXU_TARGET_ROWS = 256            # fold batch until matmul M reaches this
_VMEM_LIMIT = 48 * 1024 * 1024    # fits v7x 64 MiB; raises v5e/v6e scoped default


def _rup(n, m):
    return ((n + m - 1) // m) * m


# ----------------------------------------------------------------------------
# pltpu.roll convention probe (resolved once, outside jit)
# ----------------------------------------------------------------------------
_ROLL_CONVENTION = {}


def _roll_is_forward():
    """True iff pltpu.roll(x, s, axis=0)[i] == x[i - s] (jnp.roll convention).

    Resolved once with a tiny probe kernel so the causal shift direction can
    never silently flip.  Must be called outside jit (result is a static bool
    baked into the conv kernels).
    """
    if "fwd" not in _ROLL_CONVENTION:
        def probe(x_ref, o_ref):
            o_ref[...] = pltpu.roll(x_ref[...], 1, 0)

        x = jnp.broadcast_to(jnp.arange(8, dtype=jnp.float32)[:, None], (8, LANE))
        y = pl.pallas_call(
            probe, out_shape=jax.ShapeDtypeStruct((8, LANE), jnp.float32))(x)
        _ROLL_CONVENTION["fwd"] = bool(y[1, 0] == x[0, 0])
    return _ROLL_CONVENTION["fwd"]


# ----------------------------------------------------------------------------
# Fused dense-block kernel
# ----------------------------------------------------------------------------
def _dense_block_kernel(*refs, convs, has_trail, copy_input, Tp, roll_forward):
    """One dense-TCN block: [lead 1x1] -> dilated causal convs -> [trail 1x1].

    refs = (x, tpos, w0, b0, ..., w_{n-1}, b_{n-1}, out, [dense_scratch])
      x:     (Mt, Cin_pad)      folded (batch*time, channel) block input
      tpos:  (Mt, 1) int32      within-example time index of each folded row
      w_i:   (K, Cin_i_pad, Cout_i_pad)  resident conv weights (tap-major)
      b_i:   (1, Cout_i_pad)
      out:   (Mt, Cout_pad)
      dense_scratch (only if has_trail): (Mt, dense_width) VMEM holding the
        growing dense-concat; without a trailing transition the output block
        itself is used as the dense buffer.
    convs: static tuple of (K, dil, src_is_dense, src_width, dst_is_out,
      dst_col) describing every conv of the block, in execution order.
    """
    nconv = len(convs)
    x_ref, t_ref = refs[0], refs[1]
    wb_refs = refs[2:2 + 2 * nconv]
    o_ref = refs[2 + 2 * nconv]
    dense_ref = refs[3 + 2 * nconv] if has_trail else o_ref
    Mt = x_ref.shape[0]
    t_in_seq = t_ref[...]                                   # (Mt, 1) int32

    if copy_input:
        # dense concat keeps the block input as its first channel segment
        dense_ref[:, : x_ref.shape[1]] = x_ref[...]

    for ci, (K, dil, src_is_dense, src_w, dst_is_out, dst_col) in enumerate(convs):
        w_ref, b_ref = wb_refs[2 * ci], wb_refs[2 * ci + 1]
        src_ref = dense_ref if src_is_dense else x_ref
        dst_ref = o_ref if dst_is_out else dense_ref
        src = src_ref[:, :src_w]                 # lane-aligned (src_w % 128 == 0)
        cout = w_ref.shape[-1]

        # Causal taps: tap j contributes src[row - j*dil] when that row is in
        # range and belongs to the same example, else 0.  Implemented as a
        # sublane roll (XLU) + mask: no host padding, no unaligned slices.
        taps = []
        for j in range(K):
            off = j * dil
            if off == 0:
                taps.append(src)
            elif off >= Tp:
                taps.append(None)                # fully out of range
            else:
                shift = off if roll_forward else Mt - off
                rolled = pltpu.roll(src, shift, 0)
                taps.append(jnp.where(t_in_seq >= off, rolled, 0.0))

        # Chunk Cout so the live f32 accumulator stays small (vreg pressure);
        # every chunk is a lane-aligned, lane-dense store.
        for n0 in range(0, cout, N_CHUNK):
            nw = min(N_CHUNK, cout - n0)
            acc = jnp.zeros((Mt, nw), jnp.float32)
            for j, xs in enumerate(taps):
                if xs is None:
                    continue
                acc = acc + jnp.dot(xs, w_ref[j, :, n0:n0 + nw],
                                    preferred_element_type=jnp.float32)
            y = jnp.maximum(acc + b_ref[:, n0:n0 + nw].astype(jnp.float32), 0.0)
            dst_ref[:, dst_col + n0:dst_col + n0 + nw] = y.astype(dst_ref.dtype)


def fused_dense_block(feats, tpos, blk, *, Bt, Tp):
    """Run one fused dense block on folded activations feats: (B*Tp, Cin_pad)."""
    m_total, in_w = feats.shape
    assert in_w == blk["in_width"]
    Mt = Bt * Tp
    dtype = feats.dtype

    in_specs = [pl.BlockSpec((Mt, in_w), lambda i: (i, 0)),
                pl.BlockSpec((Mt, 1), lambda i: (i, 0))]
    args = [feats, tpos]
    for w, b in blk["wb"]:
        in_specs.append(pl.BlockSpec(w.shape, lambda i: (0, 0, 0)))  # resident
        in_specs.append(pl.BlockSpec(b.shape, lambda i: (0, 0)))
        args.extend((w, b))

    scratch = ([pltpu.VMEM((Mt, blk["dense_width"]), dtype)]
               if blk["has_trail"] else [])

    kernel = functools.partial(
        _dense_block_kernel,
        convs=blk["convs"], has_trail=blk["has_trail"],
        copy_input=blk["copy_input"], Tp=Tp,
        roll_forward=_roll_is_forward())

    return pl.pallas_call(
        kernel,
        out_shape=jax.ShapeDtypeStruct((m_total, blk["out_width"]), dtype),
        grid=(m_total // Mt,),
        in_specs=in_specs,
        out_specs=pl.BlockSpec((Mt, blk["out_width"]), lambda i: (i, 0)),
        scratch_shapes=scratch,
        compiler_params=pltpu.CompilerParams(
            dimension_semantics=("parallel",),
            vmem_limit_bytes=_VMEM_LIMIT),
    )(*args)


# ----------------------------------------------------------------------------
# Consensus (_average_batch) + classifier head: one batched matmul
# ----------------------------------------------------------------------------
def _head_kernel(x_ref, m_ref, w_ref, b_ref, o_ref, *, B, Tp):
    rows = []
    for b in range(B):                                      # B is small & static
        xb = x_ref[b * Tp:(b + 1) * Tp, :].astype(jnp.float32)   # (Tp, C)
        mb = m_ref[b * Tp:(b + 1) * Tp, :]                       # (Tp, 1) norm. mask
        rows.append(jnp.sum(xb * mb, axis=0, keepdims=True))     # masked mean
    mean = jnp.concatenate(rows, axis=0)                          # (B, C)
    logits = jnp.dot(mean, w_ref[...].astype(jnp.float32),
                     preferred_element_type=jnp.float32)
    o_ref[...] = logits + b_ref[...].astype(jnp.float32)


def consensus_linear_head(feats, lengths, head, *, B, Tp):
    """feats: (B*Tp, C_pad) folded trunk output -> (B, nc_pad) f32 logits."""
    nc_pad = head["w"].shape[-1]
    lens = lengths.astype(jnp.int32)
    t = jnp.arange(Tp, dtype=jnp.int32)[None, :]
    # normalized temporal-mean mask; jnp.maximum guards lengths == 0
    mask = jnp.where(t < lens[:, None], 1.0, 0.0) / jnp.maximum(
        lens, 1).astype(jnp.float32)[:, None]
    mask = mask.reshape(B * Tp, 1)
    return pl.pallas_call(
        functools.partial(_head_kernel, B=B, Tp=Tp),
        out_shape=jax.ShapeDtypeStruct((B, nc_pad), jnp.float32),
    )(feats, mask, head["w"], head["b"])


# ----------------------------------------------------------------------------
# Forward pass
# ----------------------------------------------------------------------------
def _pick_batch_tile(B, Tp, target_rows=_MXU_TARGET_ROWS):
    """Largest batch tile (dividing B) whose folded M = Bt*Tp hits the MXU
    target, preferring >=2 grid steps (v7x has two TensorCores)."""
    bt = max(1, min(B, -(-target_rows // Tp)))
    while bt > 1 and B % bt:
        bt -= 1
    if B // bt < 2:
        half = bt // 2
        while half >= 1 and B % half:
            half -= 1
        if half >= 1 and half * Tp >= target_rows:
            bt = half
    return bt


def dense_tcn_forward(x, lengths, B, packed, cfg):
    """DenseTCN.forward.  x: (B, T, input_size) channel-last, lengths: (B,)."""
    del B  # signature parity with the PyTorch module
    Bx, T, cin = x.shape
    dtype = packed["dtype"]
    Tp = _rup(T, SUB)
    in_seg = packed["in_width"]

    # One-time staging pad (time -> Tp sublanes, channels -> 128 lanes) and
    # fold (B, Tp, C) -> (B*Tp, C) so batch rides the MXU M dimension.
    xp = jnp.zeros((Bx, Tp, in_seg), dtype).at[:, :T, :cin].set(x.astype(dtype))
    feats = xp.reshape(Bx * Tp, in_seg)
    tpos = jnp.tile(jnp.arange(Tp, dtype=jnp.int32), Bx)[:, None]   # (B*Tp, 1)

    Bt = _pick_batch_tile(Bx, Tp)
    for blk in packed["blocks"]:
        feats = fused_dense_block(feats, tpos, blk, Bt=Bt, Tp=Tp)

    logits = consensus_linear_head(feats, lengths, packed["head"], B=Bx, Tp=Tp)
    return logits[:, :cfg["num_classes"]]


# ----------------------------------------------------------------------------
# Parameters: logical init (DenseTCN.__init__-faithful shapes) + packing into
# the lane-aligned segmented layout used by the fused kernels.
# ----------------------------------------------------------------------------
def init_dense_tcn_params(key, cfg):
    bc = cfg["block_config"]
    growth = cfg["growth_rate_set"]
    ks = cfg["kernel_size_set"]
    s = 0.2

    def nxt():
        nonlocal key
        key, sub = jax.random.split(key)
        return sub

    def conv_params(K, cin, cout):
        return dict(w=jax.random.normal(nxt(), (K, cin, cout), jnp.float32) * s,
                    b=jax.random.normal(nxt(), (1, cout), jnp.float32) * s)

    params = {"transition0": conv_params(1, cfg["input_size"], cfg["reduced_size"])}
    c = cfg["reduced_size"]
    for bi, num_layers in enumerate(bc):
        g = growth[bi]
        for li in range(num_layers):
            params[f"block{bi}_layer{li}"] = conv_params(ks[li % len(ks)], c, g)
            c += g
        if bi != len(bc) - 1:
            params[f"transition{bi + 1}"] = conv_params(1, c, cfg["reduced_size"])
            c = cfg["reduced_size"]
    num_features = cfg["reduced_size"] + bc[-1] * growth[-1]
    assert c == num_features
    params["head"] = dict(
        w=jax.random.normal(nxt(), (num_features, cfg["num_classes"]), jnp.float32) * s,
        b=jax.random.normal(nxt(), (1, cfg["num_classes"]), jnp.float32) * s)
    return params


def pack_dense_tcn_params(params, cfg, dtype=jnp.float32):
    """Pad/scatter logical parameters into the segmented, 128-lane-aligned
    layout used by the fused kernels (zero rows/cols for padded channels)."""
    bc = cfg["block_config"]
    growth = cfg["growth_rate_set"]
    ds = cfg["dilation_size_set"]
    reduced = cfg["reduced_size"]
    in_seg = _rup(cfg["input_size"], LANE)
    red_seg = _rup(reduced, LANE)
    nc_seg = _rup(cfg["num_classes"], LANE)

    def pad_conv(w, b, in_segments, cout_seg):
        w = np.asarray(w, np.float32)
        b = np.asarray(b, np.float32)
        K, _, cout = w.shape
        total = sum(seg for _, seg in in_segments)
        wp = np.zeros((K, total, cout_seg), np.float32)
        bp = np.zeros((1, cout_seg), np.float32)
        r0 = s0 = 0
        for real, seg in in_segments:
            wp[:, s0:s0 + real, :cout] = w[:, r0:r0 + real, :]
            r0 += real
            s0 += seg
        bp[:, :cout] = b
        return jnp.asarray(wp, dtype), jnp.asarray(bp, dtype)

    SRC_X, SRC_DENSE = 0, 1
    DST_DENSE, DST_OUT = 0, 1
    blocks = []
    for bi, num_layers in enumerate(bc):
        g = growth[bi]
        g_seg = _rup(g, LANE)
        has_lead = bi == 0
        has_trail = bi != len(bc) - 1
        wb, convs = [], []
        if has_lead:   # fold transition0 into the first block's kernel
            p = params["transition0"]
            wb.append(pad_conv(p["w"], p["b"], [(cfg["input_size"], in_seg)], red_seg))
            convs.append((1, 1, SRC_X, in_seg, DST_DENSE, 0))
        segs = [(reduced, red_seg)]
        for li in range(num_layers):
            p = params[f"block{bi}_layer{li}"]
            K = int(p["w"].shape[0])
            dil = ds[li % len(ds)]
            src_w = red_seg + li * g_seg
            wb.append(pad_conv(p["w"], p["b"], list(segs), g_seg))
            convs.append((K, dil, SRC_DENSE, src_w, DST_DENSE, src_w))
            segs.append((g, g_seg))
        dense_width = red_seg + num_layers * g_seg
        if has_trail:
            p = params[f"transition{bi + 1}"]
            wb.append(pad_conv(p["w"], p["b"], list(segs), red_seg))
            convs.append((1, 1, SRC_DENSE, dense_width, DST_OUT, 0))
        blocks.append(dict(
            wb=wb, convs=tuple(convs),
            in_width=in_seg if has_lead else red_seg,
            dense_width=dense_width,
            out_width=red_seg if has_trail else dense_width,
            has_trail=has_trail,
            copy_input=not has_lead))

    g_last = growth[-1]
    last_segs = [(reduced, red_seg)] + [(g_last, _rup(g_last, LANE))] * bc[-1]
    hw, hb = pad_conv(params["head"]["w"][None], params["head"]["b"],
                      last_segs, nc_seg)
    return dict(blocks=blocks, head=dict(w=hw[0], b=hb),
                in_width=in_seg, dtype=dtype)


# ----------------------------------------------------------------------------
# Pure-JAX reference (same math, unpadded), used as a correctness check.
# ----------------------------------------------------------------------------
def _conv_ref(x, w, b, dil):
    K = w.shape[0]
    T = x.shape[1]
    acc = jnp.zeros(x.shape[:2] + (w.shape[-1],), jnp.float32)
    for j in range(K):
        off = j * dil
        xs = x if off == 0 else jnp.pad(x, ((0, 0), (off, 0), (0, 0)))[:, :T, :]
        acc = acc + jnp.einsum("btc,cd->btd", xs, w[j])
    return jnp.maximum(acc + b, 0.0)


def dense_tcn_reference(x, lengths, params, cfg):
    bc = cfg["block_config"]
    ds = cfg["dilation_size_set"]
    feats = _conv_ref(x, params["transition0"]["w"], params["transition0"]["b"], 1)
    for bi, num_layers in enumerate(bc):
        for li in range(num_layers):
            p = params[f"block{bi}_layer{li}"]
            y = _conv_ref(feats, p["w"], p["b"], ds[li % len(ds)])
            feats = jnp.concatenate([feats, y], axis=-1)
        if bi != len(bc) - 1:
            p = params[f"transition{bi + 1}"]
            feats = _conv_ref(feats, p["w"], p["b"], 1)
    T = x.shape[1]
    mask = (jnp.arange(T)[None, :] < lengths[:, None]).astype(jnp.float32)
    denom = jnp.maximum(lengths, 1).astype(jnp.float32)[:, None]
    mean = jnp.sum(feats * mask[:, :, None], axis=1) / denom
    return mean @ params["head"]["w"] + params["head"]["b"]


# ----------------------------------------------------------------------------
if __name__ == "__main__":
    B, T = 2, 16
    cfg = dict(block_config=(2, 2), growth_rate_set=(16, 16), input_size=32,
               reduced_size=32, num_classes=16, kernel_size_set=(3, 5),
               dilation_size_set=(1, 2), dropout=0.2, relu_type="relu")

    root = jax.random.PRNGKey(0)
    k_params, k_x = jax.random.split(root)
    params = init_dense_tcn_params(k_params, cfg)
    x = jax.random.normal(k_x, (B, T, cfg["input_size"]), jnp.float32)
    lengths = jnp.array([T, T - 4], dtype=jnp.int32)

    # float32 pass, checked against the pure-JAX reference of the same module
    packed_f32 = pack_dense_tcn_params(params, cfg, dtype=jnp.float32)
    out = jax.block_until_ready(dense_tcn_forward(x, lengths, B, packed_f32, cfg))
    assert out.shape == (B, cfg["num_classes"])
    ref = jax.block_until_ready(dense_tcn_reference(x, lengths, params, cfg))
    np.testing.assert_allclose(np.asarray(out), np.asarray(ref),
                               rtol=5e-2, atol=8e-2)

    # bf16-operand pass (v6e/v7x configuration; f32 accumulation in-kernel)
    packed_bf16 = pack_dense_tcn_params(params, cfg, dtype=jnp.bfloat16)
    out_bf16 = jax.block_until_ready(
        dense_tcn_forward(x, lengths, B, packed_bf16, cfg))
    assert out_bf16.shape == (B, cfg["num_classes"])
    assert bool(jnp.all(jnp.isfinite(out_bf16)))

    print("KERNEL_OK")
</pallas_src>

<mosaic_0001>
module attributes {stable_mosaic.version = 11 : i64} {
  func.func @probe(%arg0: memref<8x128xf32, #tpu.memory_space<vmem>>, %arg1: memref<8x128xf32, #tpu.memory_space<vmem>>) attributes {dimension_semantics = [], scalar_prefetch = 0 : i64, scratch_operands = 0 : i64, tpu.core_type = #tpu.core_type<tc>} {
    %c0 = arith.constant 0 : index
    %c0_0 = arith.constant 0 : index
    %0 = vector.load %arg0[%c0, %c0_0] : memref<8x128xf32, #tpu.memory_space<vmem>>, vector<8x128xf32>
    %c1_i32 = arith.constant 1 : i32
    %1 = tpu.dynamic_rotate %0 by %c1_i32 dim 0 : vector<8x128xf32>, i32 -> vector<8x128xf32>
    %c0_1 = arith.constant 0 : index
    %c0_2 = arith.constant 0 : index
    %2 = vector.load %arg1[%c0_1, %c0_2] : memref<8x128xf32, #tpu.memory_space<vmem>>, vector<8x128xf32>
    tpu.vector_store %arg1[%c0_1, %c0_2], %1 {strides = array<i32>} : memref<8x128xf32, #tpu.memory_space<vmem>>, vector<8x128xf32>,
    return
  }
}

</mosaic_0001>

<llo_original>
// kernel: tpu_custom_call.1
$region0: #{tpu_custom_call.1}
  #allocation0 [shape = 'u32[]', space=smem, size = 0x4, offset = 0x4, fixed_abs, tag = 'smem constant byte address 0x4 - core index']
  #allocation1 [shape = 'u32[144,128]{1,0:T(1,128)}', space=vmem, size = 0x12000, scoped, tag = 'internal scratch']
  %s0 = inlined_call_operand.hbm [shape: f32[8,128], index: 0, kind: input, shape index: {}]
  %s1 = inlined_call_operand.hbm [shape: f32[8,128], index: 1, kind: output, shape index: {}]
  %s2 = sld [smem:[#allocation0]]
  $region18: #{tpu_custom_call.1} parent=0
    _
  %s4 = ssub.s32 1, %s2
  %s5 = scalar_select 0, %s4, %s2
  $region1: #{tpu_custom_call.1} parent=0
    #allocation2 [shape = 'u8[4096]{0}', space=vmem, size = 0x1000, scoped, tag = 'input window, operand 0, single buffered']
    #allocation3 [shape = 's32[1]{0}', space=sflag, size = 0x4, scoped, tag = 'scoped memory for tpu_custom_call.1']
    #allocation4 [shape = 's32[1]{0}', space=sflag, size = 0x4, scoped, tag = 'scoped memory for tpu_custom_call.1']
    #allocation5 [shape = 'u8[4096]{0}', space=vmem, size = 0x1000, scoped, tag = 'output window, operand 0, single buffered']
    %6 = vsyncpa [#allocation3], 0
    %7 = vsyncpa [#allocation4], 0
    // Predicated region
    $region2: #{tpu_custom_call.1} parent=1 // pred_check
      _
    $region3: #{tpu_custom_call.1} parent=1 // pred_check_branch
      %9 = sbr.rel (0) target = $region5
    $region4: #{tpu_custom_call.1} parent=1 // pred_region
      %s11 = ssub.s32 128, 128
      %12 = vsyncadd [#allocation3], %s11
      %s14 = sshll.u32 [#allocation2], 4
      %s15 = int_to_ptr.vmem [resolvable:$true] %s14
      %17 = dma.hbm_to_vmem [thread:$0]  %s0, 128, %s15, [#allocation3]
    $region5: #{tpu_custom_call.1} parent=1 // pred_fallthru
      _
    // Predicated region
    $region6: #{tpu_custom_call.1} parent=1 // pred_check
      _
    $region7: #{tpu_custom_call.1} parent=1 // pred_check_branch
      %19 = sbr.rel (0) target = $region9
    $region8: #{tpu_custom_call.1} parent=1 // pred_region
      %20 = dma.done [#allocation3], 128
    $region9: #{tpu_custom_call.1} parent=1 // pred_fallthru
      _
    %v21 = vld [vmem:[#allocation2] sm:$0xff]
    %v22 = vrot.slane %v21, 7
    %23 = vst [vmem:[#allocation5] sm:$0xff] %v22
    // Predicated region
    $region10: #{tpu_custom_call.1} parent=1 // pred_check
      _
    $region11: #{tpu_custom_call.1} parent=1 // pred_check_branch
      %25 = sbr.rel (0) target = $region13
    $region12: #{tpu_custom_call.1} parent=1 // pred_region
      %s27 = ssub.s32 128, 128
      %28 = vsyncadd [#allocation4], %s27
      %s30 = sshll.u32 [#allocation5], 4
      %s31 = int_to_ptr.vmem [resolvable:$true] %s30
      %33 = dma.vmem_to_hbm [thread:$0]  %s31, 128, %s1, [#allocation4]
    $region13: #{tpu_custom_call.1} parent=1 // pred_fallthru
      _
    // Predicated region
    $region14: #{tpu_custom_call.1} parent=1 // pred_check
      _
    $region15: #{tpu_custom_call.1} parent=1 // pred_check_branch
      %35 = sbr.rel (0) target = $region17
    $region16: #{tpu_custom_call.1} parent=1 // pred_region
      %36 = dma.done [#allocation4], 128
    $region17: #{tpu_custom_call.1} parent=1 // pred_fallthru
      _
    %37 = vsyncpa [#allocation3], 1
    %38 = vsyncpa [#allocation4], 1

</llo_original>
